<compile_context>
chip_gen: v7x
topology: tpu7x:2x2x1
jax: 0.10.0
libtpu: 0.0.40
codegen_flags: <defaults>
</compile_context>

<pallas_src>
import functools

import jax
import jax.numpy as jnp
from jax import lax
from jax.experimental import pallas as pl
from jax.experimental.pallas import tpu as pltpu


def _mix32(x):
    """splitmix32-style finalizer on uint32 (elementwise)."""
    x = x ^ (x >> 16)
    x = x * jnp.uint32(0x7FEB352D)
    x = x ^ (x >> 15)
    x = x * jnp.uint32(0x846CA68B)
    x = x ^ (x >> 16)
    return x


def _residual_kernel(seed_ref, x_ref, gamma_ref, beta_ref, w_ref, b_ref, o_ref,
                     *, p, eps, training):
    # ---- LayerNorm over last dim (stats in f32) ----
    xf = x_ref[...].astype(jnp.float32)                      # (TM, D)
    mean = jnp.mean(xf, axis=-1, keepdims=True)
    var = jnp.mean(jnp.square(xf - mean), axis=-1, keepdims=True)
    xn = (xf - mean) * lax.rsqrt(var + eps)
    xn = xn * gamma_ref[...].astype(jnp.float32) + beta_ref[...].astype(jnp.float32)

    # ---- sub_layer: Linear(D, D) on the MXU ----
    # Feed the MXU in the input dtype (bf16-in / f32-accumulate when x is bf16);
    # do NOT upcast W.
    h = jnp.dot(xn.astype(x_ref.dtype), w_ref[...],
                preferred_element_type=jnp.float32)
    h = h + b_ref[...].astype(jnp.float32)

    # ---- dropout (inverted, training mode only) ----
    if training and p > 0.0:
        keep_prob = 1.0 - p
        tm, d = h.shape
        rows = lax.broadcasted_iota(jnp.int32, (tm, d), 0).astype(jnp.uint32)
        cols = lax.broadcasted_iota(jnp.int32, (tm, d), 1).astype(jnp.uint32)
        idx = rows * jnp.uint32(d) + cols
        # Salt with the user seed and the grid tile index so every tile (and
        # every call with a new seed) draws a distinct mask.
        seed_u = seed_ref[0].astype(jnp.uint32)
        tile_u = pl.program_id(0).astype(jnp.uint32)
        salt = seed_u * jnp.uint32(0x9E3779B1) + tile_u * jnp.uint32(0x85EBCA77)
        bits = _mix32(idx + salt)
        bits = _mix32(bits ^ jnp.uint32(0x68E31DA4))
        # Top 24 bits -> uniform float in [0, 1); keep iff r < keep_prob
        # (realized keep prob differs from keep_prob by O(2^-24), negligible).
        r = (bits >> 8).astype(jnp.int32).astype(jnp.float32) * jnp.float32(1.0 / (1 << 24))
        keep = r < jnp.float32(keep_prob)
        h = jnp.where(keep, h * jnp.float32(1.0 / keep_prob), jnp.float32(0.0))

    # ---- residual add (re-read x from VMEM; keeps live-tile pressure low) ----
    o_ref[...] = (h + x_ref[...].astype(jnp.float32)).astype(o_ref.dtype)


def residual_connection_layer(x, gamma, beta, w, b, *, seed=0, dr_rate=0.1,
                              eps=1e-5, training=True, tm=None):
    """x: (B, S, D); gamma/beta: (D,); w: (D, D); b: (D,)."""
    B, S, D = x.shape
    M = B * S
    x2 = x.reshape(M, D)
    gamma2 = gamma.reshape(1, D)
    beta2 = beta.reshape(1, D)
    b2 = b.reshape(1, D)
    seed_arr = jnp.array([seed], dtype=jnp.int32)

    # --- tile the token dimension ---
    itemsize = jnp.dtype(x.dtype).itemsize
    if tm is None:
        # Aim for ~2 MiB per x tile, capped at 512 rows; sized conservatively
        # so the (x + out) double-buffers fit even v7x's smaller VMEM.
        tm = max(8, min(512, (2 * 1024 * 1024) // max(D * itemsize, 1)))
    if tm >= M:
        tm = M                       # full-extent block (always legal)
    else:
        tm = max(8, (tm // 8) * 8)   # second-to-last block dim must be %8
    grid = (pl.cdiv(M, tm),)

    # VMEM budget: double-buffered x + out tiles, resident W, small vectors.
    vmem_bytes = (2 * 2 * tm * D * itemsize
                  + D * D * jnp.dtype(w.dtype).itemsize
                  + 4 * D * 4
                  + (4 << 20))
    vmem_bytes = int(min(max(vmem_bytes, 16 << 20), 64 << 20))

    kernel = functools.partial(_residual_kernel, p=float(dr_rate),
                               eps=float(eps), training=bool(training))

    out = pl.pallas_call(
        kernel,
        out_shape=jax.ShapeDtypeStruct((M, D), x.dtype),
        grid_spec=pltpu.PrefetchScalarGridSpec(
            num_scalar_prefetch=1,
            grid=grid,
            in_specs=[
                pl.BlockSpec((tm, D), lambda i, seed: (i, 0)),   # x tile
                pl.BlockSpec((1, D), lambda i, seed: (0, 0)),    # gamma (resident)
                pl.BlockSpec((1, D), lambda i, seed: (0, 0)),    # beta  (resident)
                pl.BlockSpec((D, D), lambda i, seed: (0, 0)),    # W     (resident)
                pl.BlockSpec((1, D), lambda i, seed: (0, 0)),    # bias  (resident)
            ],
            out_specs=pl.BlockSpec((tm, D), lambda i, seed: (i, 0)),
        ),
        compiler_params=pltpu.CompilerParams(
            dimension_semantics=("parallel",),
            vmem_limit_bytes=vmem_bytes),
    )(seed_arr, x2, gamma2, beta2, w, b2)
    return out.reshape(B, S, D)


def _reference(x, gamma, beta, w, b, eps=1e-5):
    xf = x.astype(jnp.float32)
    mean = jnp.mean(xf, axis=-1, keepdims=True)
    var = jnp.mean((xf - mean) ** 2, axis=-1, keepdims=True)
    xn = (xf - mean) * lax.rsqrt(var + eps) * gamma + beta
    h = jnp.einsum("bsd,de->bse", xn, w,
                   precision=lax.Precision.HIGHEST) + b
    return h, h + xf


if __name__ == "__main__":
    key = jax.random.PRNGKey(0)
    # Lane-dense hidden dim (multiple of 128); small token count.
    B, S, D = 2, 64, 128
    dr_rate = 0.1

    k_x, k_w, k_b = jax.random.split(key, 3)
    x = jax.random.normal(k_x, (B, S, D), dtype=jnp.float32)

    gamma = jnp.ones((D,), dtype=jnp.float32)
    beta = jnp.zeros((D,), dtype=jnp.float32)
    w = jax.random.normal(k_w, (D, D), dtype=jnp.float32) * (1.0 / jnp.sqrt(D))
    b = jax.random.normal(k_b, (D,), dtype=jnp.float32) * 0.01

    # tm=64 -> 2 grid steps, exercises tiling + per-tile dropout salting.
    out_train = jax.block_until_ready(
        residual_connection_layer(x, gamma, beta, w, b,
                                  seed=1234, dr_rate=dr_rate,
                                  training=True, tm=64))
    out_eval = jax.block_until_ready(
        residual_connection_layer(x, gamma, beta, w, b,
                                  seed=0, dr_rate=dr_rate,
                                  training=False, tm=64))

    ref_h, ref_out = _reference(x, gamma, beta, w, b)

    # --- eval path: exact module semantics (dropout is identity) ---
    assert out_eval.shape == (B, S, D)
    assert jnp.allclose(out_eval, ref_out, atol=1e-2, rtol=1e-2)

    # --- train path: check dropout statistics + inverted scaling ---
    keep_prob = 1.0 - dr_rate
    dropped = (out_train == x)                 # dropped elems: out == x exactly
    frac_dropped = float(jnp.mean(dropped.astype(jnp.float32)))
    assert abs(frac_dropped - dr_rate) < 0.05, frac_dropped
    diff = jnp.where(dropped, 0.0, (out_train - x) * keep_prob - ref_h)
    assert float(jnp.max(jnp.abs(diff))) < 5e-2

    print("KERNEL_OK")
</pallas_src>

<mosaic_0001>
module attributes {stable_mosaic.version = 11 : i64} {
  func.func @_residual_kernel(%arg0: i32, %arg1: memref<1xi32, #tpu.memory_space<smem>>, %arg2: memref<64x128xf32, #tpu.memory_space<vmem>>, %arg3: memref<1x128xf32, #tpu.memory_space<vmem>>, %arg4: memref<1x128xf32, #tpu.memory_space<vmem>>, %arg5: memref<128x128xf32, #tpu.memory_space<vmem>>, %arg6: memref<1x128xf32, #tpu.memory_space<vmem>>, %arg7: memref<64x128xf32, #tpu.memory_space<vmem>>) attributes {dimension_semantics = [#tpu.dimension_semantics<parallel>], iteration_bounds = array<i64: 2>, scalar_prefetch = 1 : i64, scratch_operands = 0 : i64, tpu.core_type = #tpu.core_type<tc>, window_params = [{transform_indices = @transform_0, window_bounds = array<i64: 64, 128>}, {pipeline_mode = #tpu.pipeline_mode<synchronous>, transform_indices = @transform_1, window_bounds = array<i64: 1, 128>}, {pipeline_mode = #tpu.pipeline_mode<synchronous>, transform_indices = @transform_2, window_bounds = array<i64: 1, 128>}, {pipeline_mode = #tpu.pipeline_mode<synchronous>, transform_indices = @transform_3, window_bounds = array<i64: 128, 128>}, {pipeline_mode = #tpu.pipeline_mode<synchronous>, transform_indices = @transform_4, window_bounds = array<i64: 1, 128>}, {transform_indices = @transform_5, window_bounds = array<i64: 64, 128>}]} {
    %c0 = arith.constant 0 : index
    %c0_0 = arith.constant 0 : index
    %0 = vector.load %arg2[%c0, %c0_0] : memref<64x128xf32, #tpu.memory_space<vmem>>, vector<64x128xf32>
    %cst = arith.constant dense<0.000000e+00> : vector<64xf32>
    %1 = vector.multi_reduction <add>, %0, %cst [1] : vector<64x128xf32> to vector<64xf32>
    %2 = vector.shape_cast %1 : vector<64xf32> to vector<64x1xf32>
    %cst_1 = arith.constant 1.280000e+02 : f32
    %3 = vector.broadcast %cst_1 : f32 to vector<64x1xf32>
    %4 = arith.divf %2, %3 : vector<64x1xf32>
    %5 = vector.broadcast %4 : vector<64x1xf32> to vector<64x128xf32>
    %6 = arith.subf %0, %5 : vector<64x128xf32>
    %7 = arith.mulf %6, %6 : vector<64x128xf32>
    %cst_2 = arith.constant dense<0.000000e+00> : vector<64xf32>
    %8 = vector.multi_reduction <add>, %7, %cst_2 [1] : vector<64x128xf32> to vector<64xf32>
    %9 = vector.shape_cast %8 : vector<64xf32> to vector<64x1xf32>
    %cst_3 = arith.constant 1.280000e+02 : f32
    %10 = vector.broadcast %cst_3 : f32 to vector<64x1xf32>
    %11 = arith.divf %9, %10 : vector<64x1xf32>
    %12 = vector.broadcast %4 : vector<64x1xf32> to vector<64x128xf32>
    %13 = arith.subf %0, %12 : vector<64x128xf32>
    %cst_4 = arith.constant 9.99999974E-6 : f32
    %14 = vector.broadcast %cst_4 : f32 to vector<64x1xf32>
    %15 = arith.addf %11, %14 : vector<64x1xf32>
    %16 = math.rsqrt %15 : vector<64x1xf32>
    %17 = vector.broadcast %16 : vector<64x1xf32> to vector<64x128xf32>
    %18 = arith.mulf %13, %17 : vector<64x128xf32>
    %c0_5 = arith.constant 0 : index
    %c0_6 = arith.constant 0 : index
    %19 = vector.load %arg3[%c0_5, %c0_6] : memref<1x128xf32, #tpu.memory_space<vmem>>, vector<1x128xf32>
    %20 = vector.broadcast %19 : vector<1x128xf32> to vector<64x128xf32>
    %21 = arith.mulf %18, %20 : vector<64x128xf32>
    %c0_7 = arith.constant 0 : index
    %c0_8 = arith.constant 0 : index
    %22 = vector.load %arg4[%c0_7, %c0_8] : memref<1x128xf32, #tpu.memory_space<vmem>>, vector<1x128xf32>
    %23 = vector.broadcast %22 : vector<1x128xf32> to vector<64x128xf32>
    %24 = arith.addf %21, %23 : vector<64x128xf32>
    %c0_9 = arith.constant 0 : index
    %c0_10 = arith.constant 0 : index
    %25 = vector.load %arg5[%c0_9, %c0_10] : memref<128x128xf32, #tpu.memory_space<vmem>>, vector<128x128xf32>
    %cst_11 = arith.constant dense<0.000000e+00> : vector<64x128xf32>
    %26 = tpu.matmul %24, %25, %cst_11 {dimension_numbers = #tpu.dot_dimension_numbers<[1], [0], [0], [1], [0, 0, 1, 1], [], []>} : vector<64x128xf32>, vector<128x128xf32>, vector<64x128xf32> -> vector<64x128xf32>
    %c0_12 = arith.constant 0 : index
    %c0_13 = arith.constant 0 : index
    %27 = vector.load %arg6[%c0_12, %c0_13] : memref<1x128xf32, #tpu.memory_space<vmem>>, vector<1x128xf32>
    %28 = vector.broadcast %27 : vector<1x128xf32> to vector<64x128xf32>
    %29 = arith.addf %26, %28 : vector<64x128xf32>
    %30 = tpu.iota {dimensions = array<i32: 0>} : vector<64x128xi32>
    %31 = tpu.iota {dimensions = array<i32: 1>} : vector<64x128xi32>
    %c128_i32 = arith.constant 128 : i32
    %32 = vector.broadcast %c128_i32 : i32 to vector<64x128xi32>
    %33 = arith.muli %30, %32 : vector<64x128xi32>
    %34 = arith.addi %33, %31 : vector<64x128xi32>
    %c0_14 = arith.constant 0 : index
    %35 = memref.load %arg1[%c0_14] : memref<1xi32, #tpu.memory_space<smem>>
    %c-1640531535_i32 = arith.constant -1640531535 : i32
    %36 = arith.muli %35, %c-1640531535_i32 : i32
    %c-2048144777_i32 = arith.constant -2048144777 : i32
    %37 = arith.muli %arg0, %c-2048144777_i32 : i32
    %38 = arith.addi %36, %37 : i32
    %39 = vector.broadcast %38 : i32 to vector<64x128xi32>
    %40 = arith.addi %34, %39 : vector<64x128xi32>
    %c16_i32 = arith.constant 16 : i32
    %41 = vector.broadcast %c16_i32 : i32 to vector<64x128xi32>
    %42 = arith.shrui %40, %41 : vector<64x128xi32>
    %43 = arith.xori %40, %42 : vector<64x128xi32>
    %c2146121005_i32 = arith.constant 2146121005 : i32
    %44 = vector.broadcast %c2146121005_i32 : i32 to vector<64x128xi32>
    %45 = arith.muli %43, %44 : vector<64x128xi32>
    %c15_i32 = arith.constant 15 : i32
    %46 = vector.broadcast %c15_i32 : i32 to vector<64x128xi32>
    %47 = arith.shrui %45, %46 : vector<64x128xi32>
    %48 = arith.xori %45, %47 : vector<64x128xi32>
    %c-2073254261_i32 = arith.constant -2073254261 : i32
    %49 = vector.broadcast %c-2073254261_i32 : i32 to vector<64x128xi32>
    %50 = arith.muli %48, %49 : vector<64x128xi32>
    %c16_i32_15 = arith.constant 16 : i32
    %51 = vector.broadcast %c16_i32_15 : i32 to vector<64x128xi32>
    %52 = arith.shrui %50, %51 : vector<64x128xi32>
    %53 = arith.xori %50, %52 : vector<64x128xi32>
    %c1759714724_i32 = arith.constant 1759714724 : i32
    %54 = vector.broadcast %c1759714724_i32 : i32 to vector<64x128xi32>
    %55 = arith.xori %53, %54 : vector<64x128xi32>
    %c16_i32_16 = arith.constant 16 : i32
    %56 = vector.broadcast %c16_i32_16 : i32 to vector<64x128xi32>
    %57 = arith.shrui %55, %56 : vector<64x128xi32>
    %58 = arith.xori %55, %57 : vector<64x128xi32>
    %c2146121005_i32_17 = arith.constant 2146121005 : i32
    %59 = vector.broadcast %c2146121005_i32_17 : i32 to vector<64x128xi32>
    %60 = arith.muli %58, %59 : vector<64x128xi32>
    %c15_i32_18 = arith.constant 15 : i32
    %61 = vector.broadcast %c15_i32_18 : i32 to vector<64x128xi32>
    %62 = arith.shrui %60, %61 : vector<64x128xi32>
    %63 = arith.xori %60, %62 : vector<64x128xi32>
    %c-2073254261_i32_19 = arith.constant -2073254261 : i32
    %64 = vector.broadcast %c-2073254261_i32_19 : i32 to vector<64x128xi32>
    %65 = arith.muli %63, %64 : vector<64x128xi32>
    %c16_i32_20 = arith.constant 16 : i32
    %66 = vector.broadcast %c16_i32_20 : i32 to vector<64x128xi32>
    %67 = arith.shrui %65, %66 : vector<64x128xi32>
    %68 = arith.xori %65, %67 : vector<64x128xi32>
    %c8_i32 = arith.constant 8 : i32
    %69 = vector.broadcast %c8_i32 : i32 to vector<64x128xi32>
    %70 = arith.shrui %68, %69 : vector<64x128xi32>
    %71 = arith.sitofp %70 : vector<64x128xi32> to vector<64x128xf32>
    %cst_21 = arith.constant 5.96046448E-8 : f32
    %72 = vector.broadcast %cst_21 : f32 to vector<64x128xf32>
    %73 = arith.mulf %71, %72 : vector<64x128xf32>
    %cst_22 = arith.constant 0.899999976 : f32
    %74 = vector.broadcast %cst_22 : f32 to vector<64x128xf32>
    %75 = arith.cmpf olt, %73, %74 : vector<64x128xf32>
    %cst_23 = arith.constant 1.11111116 : f32
    %76 = vector.broadcast %cst_23 : f32 to vector<64x128xf32>
    %77 = arith.mulf %29, %76 : vector<64x128xf32>
    %cst_24 = arith.constant 0.000000e+00 : f32
    %78 = vector.broadcast %cst_24 : f32 to vector<64x128xf32>
    %79 = arith.select %75, %77, %78 : vector<64x128xi1>, vector<64x128xf32>
    %c0_25 = arith.constant 0 : index
    %c0_26 = arith.constant 0 : index
    %80 = vector.load %arg2[%c0_25, %c0_26] : memref<64x128xf32, #tpu.memory_space<vmem>>, vector<64x128xf32>
    %81 = arith.addf %79, %80 : vector<64x128xf32>
    %c0_27 = arith.constant 0 : index
    %c0_28 = arith.constant 0 : index
    %82 = vector.load %arg7[%c0_27, %c0_28] : memref<64x128xf32, #tpu.memory_space<vmem>>, vector<64x128xf32>
    tpu.vector_store %arg7[%c0_27, %c0_28], %81 {strides = array<i32>} : memref<64x128xf32, #tpu.memory_space<vmem>>, vector<64x128xf32>,
    return
  }
  func.func @transform_0(%arg0: i32, %arg1: memref<1xi32, #tpu.memory_space<smem>>) -> (i32, i32) {
    %c0_i32 = arith.constant 0 : i32
    %c0_i32_0 = arith.constant 0 : i32
    return %arg0, %c0_i32 : i32, i32
  }
  func.func @transform_1(%arg0: i32, %arg1: memref<1xi32, #tpu.memory_space<smem>>) -> (i32, i32) {
    %c0_i32 = arith.constant 0 : i32
    %c0_i32_0 = arith.constant 0 : i32
    %c0_i32_1 = arith.constant 0 : i32
    return %c0_i32, %c0_i32_0 : i32, i32
  }
  func.func @transform_2(%arg0: i32, %arg1: memref<1xi32, #tpu.memory_space<smem>>) -> (i32, i32) {
    %c0_i32 = arith.constant 0 : i32
    %c0_i32_0 = arith.constant 0 : i32
    %c0_i32_1 = arith.constant 0 : i32
    return %c0_i32, %c0_i32_0 : i32, i32
  }
  func.func @transform_3(%arg0: i32, %arg1: memref<1xi32, #tpu.memory_space<smem>>) -> (i32, i32) {
    %c0_i32 = arith.constant 0 : i32
    %c0_i32_0 = arith.constant 0 : i32
    %c0_i32_1 = arith.constant 0 : i32
    return %c0_i32, %c0_i32_0 : i32, i32
  }
  func.func @transform_4(%arg0: i32, %arg1: memref<1xi32, #tpu.memory_space<smem>>) -> (i32, i32) {
    %c0_i32 = arith.constant 0 : i32
    %c0_i32_0 = arith.constant 0 : i32
    %c0_i32_1 = arith.constant 0 : i32
    return %c0_i32, %c0_i32_0 : i32, i32
  }
  func.func @transform_5(%arg0: i32, %arg1: memref<1xi32, #tpu.memory_space<smem>>) -> (i32, i32) {
    %c0_i32 = arith.constant 0 : i32
    %c0_i32_0 = arith.constant 0 : i32
    return %arg0, %c0_i32 : i32, i32
  }
}

</mosaic_0001>

<llo_original>
// kernel: tpu_custom_call.1
$region0: #{tpu_custom_call.1}
  #allocation0 [shape = 'u32[]', space=smem, size = 0x4, offset = 0x4, fixed_abs, tag = 'smem constant byte address 0x4 - core index']
  #allocation1 [shape = 'u32[144,128]{1,0:T(1,128)}', space=vmem, size = 0x12000, scoped, tag = 'internal scratch']
  #allocation2 [shape = 's32[1]{0}', space=sflag, size = 0x4, scoped, tag = 'scoped memory for tpu_custom_call.1']
  #allocation3 [shape = 's32[1]{0:T(128)S(6)}', space=smem, size = 0x200, scoped, tag = 'prefetched SMEM operand 0']
  %s0 = inlined_call_operand.<no memory space> [shape: s32[1], index: 0, kind: input, shape index: {}]
  %s1 = inlined_call_operand.hbm [shape: f32[128,128], index: 1, kind: input, shape index: {}]
  %s2 = inlined_call_operand.vmem [shape: f32[1,128], index: 2, kind: input, shape index: {}]
  %s3 = inlined_call_operand.vmem [shape: f32[1,128], index: 3, kind: input, shape index: {}]
  %s4 = inlined_call_operand.hbm [shape: f32[128,128], index: 4, kind: input, shape index: {}]
  %s5 = inlined_call_operand.vmem [shape: f32[1,128], index: 5, kind: input, shape index: {}]
  %s6 = inlined_call_operand.hbm [shape: f32[128,128], index: 6, kind: output, shape index: {}]
  %s7 = sld [smem:[#allocation0]]
  $region61: #{tpu_custom_call.1} parent=0
    _
  %s9 = ssub.s32 1, %s7
  %s10 = scalar_select 0, %s9, %s7
  %11 = sst [smem:[#allocation3]] %s0
  $region1: #{tpu_custom_call.1} parent=0
    #allocation4 [shape = 'u8[65536]{0}', space=vmem, size = 0x10000, scoped, tag = 'input window, operand 1']
    #allocation5 [shape = 's32[2]{0}', space=sflag, size = 0x8, scoped, tag = 'scoped memory for tpu_custom_call.1']
    #allocation6 [shape = 's32[2]{0}', space=sflag, size = 0x8, scoped, tag = 'scoped memory for tpu_custom_call.1']
    #allocation7 [shape = 'u8[65536]{0}', space=vmem, size = 0x10000, scoped, tag = 'input window, operand 4, single buffered']
    #allocation8 [shape = 's32[1]{0}', space=sflag, size = 0x4, scoped, tag = 'scoped memory for tpu_custom_call.1']
    #allocation9 [shape = 'u8[65536]{0}', space=vmem, size = 0x10000, scoped, tag = 'output window, operand 0']
    %12 = vsyncpa [#allocation5], 0
    %s13 = scalar_lea.sflag [#allocation5], 1
    %14 = vsyncpa %s13, 0
    %15 = vsyncpa [#allocation8], 0
    %16 = vsyncpa [#allocation6], 0
    %s17 = scalar_lea.sflag [#allocation6], 1
    %18 = vsyncpa %s17, 0
    loop: start=0, step=1, limit=4
    $region2: #{tpu_custom_call.1} parent=1 // loop_pre_header
      _
    $region3: #{tpu_custom_call.1} parent=1 // loop_header
      %s20 = sphi 0, %s24
      %p21 = scmp.ge.s32.totalorder %s20, 4
      %s30 = sphi 0, %s32
      %s33 = sphi 0, %s30
      %s34 = sphi 0, %s33
      %s50 = sphi 0, %s34
      %s54 = sphi 0, %s54
      %s56 = sphi 0, %s54
      %s57 = sphi 0, %s56
      %s71 = sphi 0, %s57
      %s75 = sphi 0, %s75
      %s77 = sphi 0, %s75
      %s78 = sphi 0, %s77
      %s92 = sphi 0, %s78
      %s96 = sphi 0, %s96
      %s98 = sphi 0, %s96
      %s99 = sphi 0, %s98
      %s113 = sphi 0, %s99
      %s117 = sphi 0, %s117
      %s119 = sphi 0, %s117
      %s120 = sphi 0, %s119
      %s134 = sphi 0, %s120
      %s140 = sphi 0, %s142
      %s143 = sphi 0, %s140
      %s144 = sphi 0, %s143
      %s160 = sphi 0, %s144
    $region4: #{tpu_custom_call.1} parent=1 // loop_header_branch
      %23 = sbr.rel (%p21) target = $region8
    $region5: #{tpu_custom_call.1} parent=1 // loop_body
      %s25 = ssub.s32 %s20, 1
      %s26 = ssub.s32 %s20, 2
      %s27 = sadd.s32 %s20, 1
      %s28 = ssub.s32 %s20, %s27
      %p29 = scmp.eq.s32.totalorder %s28, 0
      %s31 = sadd.s32 %s30, 1
      %s32 = scalar_select %p29, %s30, %s31
      %p35 = pneg %p29
      %p36 = scmp.eq.s32.totalorder %s20, 1
      %p37 = por %p35, %p36
      %p38 = scmp.ne.s32.totalorder %s30, %s33
      %p39 = scmp.eq.s32.totalorder %s20, 0
      %p40 = por %p38, %p39
      %p41 = scmp.ne.s32.totalorder %s30, %s33
      %p42 = scmp.eq.s32.totalorder %s25, 1
      %p43 = por %p41, %p42
      %p44 = scmp.ne.s32.totalorder %s33, %s34
      %p45 = scmp.eq.s32.totalorder %s25, 0
      %p46 = por %p44, %p45
      %p47 = scmp.ne.s32.totalorder %s33, %s34
      %p48 = scmp.eq.s32.totalorder %s26, 1
      %p49 = por %p47, %p48
      %p51 = scmp.ne.s32.totalorder %s34, %s50
      %p52 = scmp.eq.s32.totalorder %s26, 0
      %p53 = por %p51, %p52
      %s55 = sadd.s32 %s54, 1
      %p58 = scmp.eq.s32.totalorder %s20, 1
      %p59 = scmp.ne.s32.totalorder %s54, %s56
      %p60 = scmp.eq.s32.totalorder %s20, 0
      %p61 = por %p59, %p60
      %p62 = scmp.ne.s32.totalorder %s54, %s56
      %p63 = scmp.eq.s32.totalorder %s25, 1
      %p64 = por %p62, %p63
      %p65 = scmp.ne.s32.totalorder %s56, %s57
      %p66 = scmp.eq.s32.totalorder %s25, 0
      %p67 = por %p65, %p66
      %p68 = scmp.ne.s32.totalorder %s56, %s57
      %p69 = scmp.eq.s32.totalorder %s26, 1
      %p70 = por %p68, %p69
      %p72 = scmp.ne.s32.totalorder %s57, %s71
      %p73 = scmp.eq.s32.totalorder %s26, 0
      %p74 = por %p72, %p73
      %s76 = sadd.s32 %s75, 1
      %p79 = scmp.eq.s32.totalorder %s20, 1
      %p80 = scmp.ne.s32.totalorder %s75, %s77
      %p81 = scmp.eq.s32.totalorder %s20, 0
      %p82 = por %p80, %p81
      %p83 = scmp.ne.s32.totalorder %s75, %s77
      %p84 = scmp.eq.s32.totalorder %s25, 1
      %p85 = por %p83, %p84
      %p86 = scmp.ne.s32.totalorder %s77, %s78
      %p87 = scmp.eq.s32.totalorder %s25, 0
      %p88 = por %p86, %p87
      %p89 = scmp.ne.s32.totalorder %s77, %s78
      %p90 = scmp.eq.s32.totalorder %s26, 1
      %p91 = por %p89, %p90
      %p93 = scmp.ne.s32.totalorder %s78, %s92
      %p94 = scmp.eq.s32.totalorder %s26, 0
      %p95 = por %p93, %p94
      %s97 = sadd.s32 %s96, 1
      %p100 = scmp.eq.s32.totalorder %s20, 1
      %p101 = scmp.ne.s32.totalorder %s96, %s98
      %p102 = scmp.eq.s32.totalorder %s20, 0
      %p103 = por %p101, %p102
      %p104 = scmp.ne.s32.totalorder %s96, %s98
      %p105 = scmp.eq.s32.totalorder %s25, 1
      %p106 = por %p104, %p105
      %p107 = scmp.ne.s32.totalorder %s98, %s99
      %p108 = scmp.eq.s32.totalorder %s25, 0
      %p109 = por %p107, %p108
      %p110 = scmp.ne.s32.totalorder %s98, %s99
      %p111 = scmp.eq.s32.totalorder %s26, 1
      %p112 = por %p110, %p111
      %p114 = scmp.ne.s32.totalorder %s99, %s113
      %p115 = scmp.eq.s32.totalorder %s26, 0
      %p116 = por %p114, %p115
      %s118 = sadd.s32 %s117, 1
      %p121 = scmp.eq.s32.totalorder %s20, 1
      %p122 = scmp.ne.s32.totalorder %s117, %s119
      %p123 = scmp.eq.s32.totalorder %s20, 0
      %p124 = por %p122, %p123
      %p125 = scmp.ne.s32.totalorder %s117, %s119
      %p126 = scmp.eq.s32.totalorder %s25, 1
      %p127 = por %p125, %p126
      %p128 = scmp.ne.s32.totalorder %s119, %s120
      %p129 = scmp.eq.s32.totalorder %s25, 0
      %p130 = por %p128, %p129
      %p131 = scmp.ne.s32.totalorder %s119, %s120
      %p132 = scmp.eq.s32.totalorder %s26, 1
      %p133 = por %p131, %p132
      %p135 = scmp.ne.s32.totalorder %s120, %s134
      %p136 = scmp.eq.s32.totalorder %s26, 0
      %p137 = por %p135, %p136
      %s138 = ssub.s32 %s20, %s27
      %p139 = scmp.eq.s32.totalorder %s138, 0
      %s141 = sadd.s32 %s140, 1
      %s142 = scalar_select %p139, %s140, %s141
      %p145 = pneg %p139
      %p146 = scmp.eq.s32.totalorder %s20, 1
      %p147 = por %p145, %p146
      %p148 = scmp.ne.s32.totalorder %s140, %s143
      %p149 = scmp.eq.s32.totalorder %s20, 0
      %p150 = por %p148, %p149
      %p151 = scmp.ne.s32.totalorder %s140, %s143
      %p152 = scmp.eq.s32.totalorder %s25, 1
      %p153 = por %p151, %p152
      %p154 = scmp.ne.s32.totalorder %s143, %s144
      %p155 = scmp.eq.s32.totalorder %s25, 0
      %p156 = por %p154, %p155
      %p157 = scmp.ne.s32.totalorder %s143, %s144
      %p158 = scmp.eq.s32.totalorder %s26, 1
      %p159 = por %p157, %p158
      %p161 = scmp.ne.s32.totalorder %s144, %s160
      %p162 = scmp.eq.s32.totalorder %s26, 0
      %p163 = por %p161, %p162
      %p164 = scmp.le.s32.totalorder 1, %s20
      %p165 = scmp.lt.s32.totalorder %s20, 3
      %p166 = pnand %p164, %p165
      %p167 = pneg %p166
      // Predicated region
      $region9: #{tpu_custom_call.1} parent=5 // pred_check
        _
      $region10: #{tpu_custom_call.1} parent=5 // pred_check_branch
        %169 = sbr.rel (%p166) target = $region12
      $region11: #{tpu_custom_call.1} parent=5 // pred_region
        %s170 = ssub.s32 %s20, 1
        // Predicated region
        $region13: #{tpu_custom_call.1} parent=11 // pred_check
          %p171 = pneg %p67
        $region14: #{tpu_custom_call.1} parent=11 // pred_check_branch
          %173 = sbr.rel (%p171) target = $region16
        $region15: #{tpu_custom_call.1} parent=11 // pred_region
          _
        $region16: #{tpu_custom_call.1} parent=11 // pred_fallthru
          _
        // Predicated region
        $region17: #{tpu_custom_call.1} parent=11 // pred_check
          %p174 = pneg %p88
        $region18: #{tpu_custom_call.1} parent=11 // pred_check_branch
          %176 = sbr.rel (%p174) target = $region20
        $region19: #{tpu_custom_call.1} parent=11 // pred_region
          _
        $region20: #{tpu_custom_call.1} parent=11 // pred_fallthru
          _
        // Predicated region
        $region21: #{tpu_custom_call.1} parent=11 // pred_check
          %p177 = pneg %p109
        $region22: #{tpu_custom_call.1} parent=11 // pred_check_branch
          %179 = sbr.rel (%p177) target = $region24
        $region23: #{tpu_custom_call.1} parent=11 // pred_region
          %s181 = ssub.s32 2048, 2048
          %182 = vsyncadd [#allocation8], %s181
          %s183 = sshll.u32 [#allocation7], 4
          %s184 = int_to_ptr.vmem [resolvable:$true] %s183
          %189 = dma.hbm_to_vmem [thread:$0]  %s4, 2048, %s184, [#allocation8], 128, 128, 8
        $region24: #{tpu_custom_call.1} parent=11 // pred_fallthru
          _
        // Predicated region
        $region25: #{tpu_custom_call.1} parent=11 // pred_check
          %p190 = pneg %p130
        $region26: #{tpu_custom_call.1} parent=11 // pred_check_branch
          %192 = sbr.rel (%p190) target = $region28
        $region27: #{tpu_custom_call.1} parent=11 // pred_region
          _
        $region28: #{tpu_custom_call.1} parent=11 // pred_fallthru
          _
      $region12: #{tpu_custom_call.1} parent=5 // pred_fallthru
        _
      %p193 = scmp.lt.s32.totalorder %s20, 2
      // Predicated region
      $region29: #{tpu_custom_call.1} parent=5 // pred_check
        %p194 = pneg %p193
      $region30: #{tpu_custom_call.1} parent=5 // pred_check_branch
        %196 = sbr.rel (%p194) target = $region32
      $region31: #{tpu_custom_call.1} parent=5 // pred_region
        // Predicated region
        $region33: #{tpu_custom_call.1} parent=31 // pred_check
          %p197 = pneg %p40
        $region34: #{tpu_custom_call.1} parent=31 // pred_check_branch
          %199 = sbr.rel (%p197) target = $region36
        $region35: #{tpu_custom_call.1} parent=31 // pred_region
          %s200 = sand.u32 %s30, 1
          %s201 = scalar_lea.sflag [#allocation5], %s200
          %s202 = sand.u32 %s30, 1
          %s203 = smul.addr %s202, 64
          %s204 = scalar_lea.vmem [#allocation4], %s203
          %s205 = smul.u32 8, %s20
          %s207 = ssub.s32 1024, 1024
          %208 = vsyncadd %s201, %s207
          %s209 = smul.addr %s205, 128
          %s210 = scalar_lea.hbm %s1, %s209
          %s211 = sshll.u32 %s204, 4
          %s212 = int_to_ptr.vmem [resolvable:$true] %s211
          %217 = dma.hbm_to_vmem [thread:$0]  %s210, 1024, %s212, %s201, 128, 128, 8
        $region36: #{tpu_custom_call.1} parent=31 // pred_fallthru
          _
      $region32: #{tpu_custom_call.1} parent=5 // pred_fallthru
        _
      %p218 = scmp.le.s32.totalorder 1, %s20
      %p219 = scmp.lt.s32.totalorder %s20, 3
      %p220 = pnand %p218, %p219
      %p221 = pneg %p220
      // Predicated region
      $region37: #{tpu_custom_call.1} parent=5 // pred_check
        _
      $region38: #{tpu_custom_call.1} parent=5 // pred_check_branch
        %223 = sbr.rel (%p220) target = $region40
      $region39: #{tpu_custom_call.1} parent=5 // pred_region
        %s224 = ssub.s32 %s20, 1
        %s225 = sand.u32 %s33, 1
        %s226 = scalar_lea.sflag [#allocation5], %s225
        %s227 = sand.u32 %s33, 1
        %s228 = smul.addr %s227, 64
        %s229 = scalar_lea.vmem [#allocation4], %s228
        // Predicated region
        $region41: #{tpu_custom_call.1} parent=39 // pred_check
          %p230 = pneg %p46
        $region42: #{tpu_custom_call.1} parent=39 // pred_check_branch
          %232 = sbr.rel (%p230) target = $region44
        $region43: #{tpu_custom_call.1} parent=39 // pred_region
          %233 = dma.done %s226, 1024
        $region44: #{tpu_custom_call.1} parent=39 // pred_fallthru
          _
        // Predicated region
        $region45: #{tpu_custom_call.1} parent=39 // pred_check
          %p234 = pneg %p109
        $region46: #{tpu_custom_call.1} parent=39 // pred_check_branch
          %236 = sbr.rel (%p234) target = $region48
        $region47: #{tpu_custom_call.1} parent=39 // pred_region
          %237 = dma.done [#allocation8], 2048
        $region48: #{tpu_custom_call.1} parent=39 // pred_fallthru
          _
        %s238 = sand.u32 %s33, 1
        %s239 = scalar_lea.sflag [#allocation5], %s238
        %s240 = sand.u32 %s33, 1
        %s241 = smul.addr %s240, 64
        %s242 = scalar_lea.vmem [#allocation4], %s241
        %p243 = pneg %p46
        %p244 = pneg %p43
        %p245 = pneg %p67
        %p246 = pneg %p64
        %p247 = pneg %p88
        %p248 = pneg %p85
        %p249 = pneg %p109
        %p250 = pneg %p106
        %p251 = pneg %p130
        %p252 = pneg %p127
        %p253 = pneg %p156
        %p254 = pneg %p153
        %s255 = sand.u32 %s143, 1
        %s256 = scalar_lea.sflag [#allocation6], %s255
        %s257 = sand.u32 %s143, 1
        %s258 = smul.addr %s257, 64
        %s259 = scalar_lea.vmem [#allocation9], %s258
        %s260 = smul.u32 8, %s25
        %s261 = smul.u32 8, %s25
        %v262 = vld [vmem:[%s229] sm:$0xff]
        %v263 = vld [vmem:[%s229 + $0x8] sm:$0xff]
        %v264 = vld [vmem:[%s229 + $0x10] sm:$0xff]
        %v265 = vld [vmem:[%s229 + $0x18] sm:$0xff]
        %v266 = vld [vmem:[%s229 + $0x20] sm:$0xff]
        %v267 = vld [vmem:[%s229 + $0x28] sm:$0xff]
        %v268 = vld [vmem:[%s229 + $0x30] sm:$0xff]
        %v269 = vld [vmem:[%s229 + $0x38] sm:$0xff]
        %270 = vadd.xlane.f32.xlu0 %v262
        %v271 = vpop.xlane.xlu0 %270
        %272 = vadd.xlane.f32.xlu0 %v263
        %v273 = vpop.xlane.xlu0 %272
        %274 = vadd.xlane.f32.xlu0 %v264
        %v275 = vpop.xlane.xlu0 %274
        %276 = vadd.xlane.f32.xlu0 %v265
        %v277 = vpop.xlane.xlu0 %276
        %278 = vadd.xlane.f32.xlu0 %v266
        %v279 = vpop.xlane.xlu0 %278
        %280 = vadd.xlane.f32.xlu0 %v267
        %v281 = vpop.xlane.xlu0 %280
        %282 = vadd.xlane.f32.xlu0 %v268
        %v283 = vpop.xlane.xlu0 %282
        %284 = vadd.xlane.f32.xlu0 %v269
        %v285 = vpop.xlane.xlu0 %284
        %v286 = vrcp.pop 128.0
        %v287 = vmul.f32 %v271, %v286
        %v288 = vmul.f32 %v273, %v286
        %v289 = vmul.f32 %v275, %v286
        %v290 = vmul.f32 %v277, %v286
        %v291 = vmul.f32 %v279, %v286
        %v292 = vmul.f32 %v281, %v286
        %v293 = vmul.f32 %v283, %v286
        %v294 = vmul.f32 %v285, %v286
        %v295 = vsub.f32 %v262, %v287
        %v296 = vsub.f32 %v263, %v288
        %v297 = vsub.f32 %v264, %v289
        %v298 = vsub.f32 %v265, %v290
        %v299 = vsub.f32 %v266, %v291
        %v300 = vsub.f32 %v267, %v292
        %v301 = vsub.f32 %v268, %v293
        %v302 = vsub.f32 %v269, %v294
        %v303 = vmul.f32 %v295, %v295
        %v304 = vmul.f32 %v296, %v296
        %v305 = vmul.f32 %v297, %v297
        %v306 = vmul.f32 %v298, %v298
        %v307 = vmul.f32 %v299, %v299
        %v308 = vmul.f32 %v300, %v300
        %v309 = vmul.f32 %v301, %v301
        %v310 = vmul.f32 %v302, %v302
        %311 = vadd.xlane.f32.xlu0 %v303
        %v312 = vpop.xlane.xlu0 %311
        %313 = vadd.xlane.f32.xlu0 %v304
        %v314 = vpop.xlane.xlu0 %313
        %315 = vadd.xlane.f32.xlu0 %v305
        %v316 = vpop.xlane.xlu0 %315
        %317 = vadd.xlane.f32.xlu0 %v306
        %v318 = vpop.xlane.xlu0 %317
        %319 = vadd.xlane.f32.xlu0 %v307
        %v320 = vpop.xlane.xlu0 %319
        %321 = vadd.xlane.f32.xlu0 %v308
        %v322 = vpop.xlane.xlu0 %321
        %323 = vadd.xlane.f32.xlu0 %v309
        %v324 = vpop.xlane.xlu0 %323
        %325 = vadd.xlane.f32.xlu0 %v310
        %v326 = vpop.xlane.xlu0 %325
        %v327 = vmul.f32 %v312, %v286
        %v328 = vmul.f32 %v314, %v286
        %v329 = vmul.f32 %v316, %v286
        %v330 = vmul.f32 %v318, %v286
        %v331 = vmul.f32 %v320, %v286
        %v332 = vmul.f32 %v322, %v286
        %v333 = vmul.f32 %v324, %v286
        %v334 = vmul.f32 %v326, %v286
        %v335 = vadd.f32 %v327, 1e-05
        %v336 = vadd.f32 %v328, 1e-05
        %v337 = vadd.f32 %v329, 1e-05
        %v338 = vadd.f32 %v330, 1e-05
        %v339 = vadd.f32 %v331, 1e-05
        %v340 = vadd.f32 %v332, 1e-05
        %v341 = vadd.f32 %v333, 1e-05
        %v342 = vadd.f32 %v334, 1e-05
        %v343 = vrsqrt.pop %v335
        %v344 = vrsqrt.pop %v336
        %v345 = vrsqrt.pop %v337
        %v346 = vrsqrt.pop %v338
        %v347 = vrsqrt.pop %v339
        %v348 = vrsqrt.pop %v340
        %v349 = vrsqrt.pop %v341
        %v350 = vrsqrt.pop %v342
        %v351 = vmul.f32 %v295, %v343
        %v352 = vmul.f32 %v296, %v344
        %v353 = vmul.f32 %v297, %v345
        %v354 = vmul.f32 %v298, %v346
        %v355 = vmul.f32 %v299, %v347
        %v356 = vmul.f32 %v300, %v348
        %v357 = vmul.f32 %v301, %v349
        %v358 = vmul.f32 %v302, %v350
        %v359 = vld [vmem:[%s2] sm:$0x1]
        %v361 = vlaneseq
        %v362 = vshrl.u32 %v361, 7
        %v363 = vsub.s32 0, %v362
        %v364 = vrot.slane %v359, %v363
        %v366 = vmul.f32 %v351, %v364
        %v367 = vmul.f32 %v352, %v364
        %v368 = vmul.f32 %v353, %v364
        %v369 = vmul.f32 %v354, %v364
        %v370 = vmul.f32 %v355, %v364
        %v371 = vmul.f32 %v356, %v364
        %v372 = vmul.f32 %v357, %v364
        %v373 = vmul.f32 %v358, %v364
        %v374 = vld [vmem:[%s3] sm:$0x1]
        %v376 = vlaneseq
        %v377 = vshrl.u32 %v376, 7
        %v378 = vsub.s32 0, %v377
        %v379 = vrot.slane %v374, %v378
        %v381 = vadd.f32 %v366, %v379
        %v382 = vadd.f32 %v367, %v379
        %v383 = vadd.f32 %v368, %v379
        %v384 = vadd.f32 %v369, %v379
        %v385 = vadd.f32 %v370, %v379
        %v386 = vadd.f32 %v371, %v379
        %v387 = vadd.f32 %v372, %v379
        %v388 = vadd.f32 %v373, %v379
        %v389 = vld [vmem:[#allocation7] sm:$0xff]
        %v390 = vld [vmem:[#allocation7 + $0x8] sm:$0xff]
        %v391 = vld [vmem:[#allocation7 + $0x10] sm:$0xff]
        %v392 = vld [vmem:[#allocation7 + $0x18] sm:$0xff]
        %v393 = vld [vmem:[#allocation7 + $0x20] sm:$0xff]
        %v394 = vld [vmem:[#allocation7 + $0x28] sm:$0xff]
        %v395 = vld [vmem:[#allocation7 + $0x30] sm:$0xff]
        %v396 = vld [vmem:[#allocation7 + $0x38] sm:$0xff]
        %v397 = vld [vmem:[#allocation7 + $0x40] sm:$0xff]
        %v398 = vld [vmem:[#allocation7 + $0x48] sm:$0xff]
        %v399 = vld [vmem:[#allocation7 + $0x50] sm:$0xff]
        %v400 = vld [vmem:[#allocation7 + $0x58] sm:$0xff]
        %v401 = vld [vmem:[#allocation7 + $0x60] sm:$0xff]
        %v402 = vld [vmem:[#allocation7 + $0x68] sm:$0xff]
        %v403 = vld [vmem:[#allocation7 + $0x70] sm:$0xff]
        %v404 = vld [vmem:[#allocation7 + $0x78] sm:$0xff]
        %v405 = vld [vmem:[%s5] sm:$0x1]
        %v407 = vlaneseq
        %v408 = vshrl.u32 %v407, 7
        %v409 = vsub.s32 0, %v408
        %v410 = vrot.slane %v405, %v409
        %412 = vmatprep.subr.mxu0 0.0
        %413 = vmatpush1.msra.mxu0 %v389
        %414 = vmatprep.subr.mxu0 0.0
        %415 = vmatpush1.msra.mxu0 %v390
        %416 = vmatprep.subr.mxu0 0.0
        %417 = vmatpush1.msra.mxu0 %v391
        %418 = vmatprep.subr.mxu0 0.0
        %419 = vmatpush1.msra.mxu0 %v392
        %420 = vmatprep.subr.mxu0 0.0
        %421 = vmatpush1.msra.mxu0 %v393
        %422 = vmatprep.subr.mxu0 0.0
        %423 = vmatpush1.msra.mxu0 %v394
        %424 = vmatprep.subr.mxu0 0.0
        %425 = vmatpush1.msra.mxu0 %v395
        %426 = vmatprep.subr.mxu0 0.0
        %427 = vmatpush1.msra.mxu0 %v396
        %428 = vmatprep.subr.mxu0 0.0
        %429 = vmatpush1.msra.mxu0 %v397
        %430 = vmatprep.subr.mxu0 0.0
        %431 = vmatpush1.msra.mxu0 %v398
        %432 = vmatprep.subr.mxu0 0.0
        %433 = vmatpush1.msra.mxu0 %v399
        %434 = vmatprep.subr.mxu0 0.0
        %435 = vmatpush1.msra.mxu0 %v400
        %436 = vmatprep.subr.mxu0 0.0
        %437 = vmatpush1.msra.mxu0 %v401
        %438 = vmatprep.subr.mxu0 0.0
        %439 = vmatpush1.msra.mxu0 %v402
        %440 = vmatprep.subr.mxu0 0.0
        %441 = vmatpush1.msra.mxu0 %v403
        %442 = vmatprep.subr.mxu0 0.0
        %443 = vmatpush1.msra.mxu0 %v404
        %444 = vmatprep.subr.mxu0 0.0
        %445 = vmatpush1.msra.mxu0 0.0
        %446 = vmatprep.subr.mxu0 0.0
        %447 = vmatpush1.msra.mxu0 0.0
        %448 = vmatprep.subr.mxu0 0.0
        %449 = vmatpush1.msra.mxu0 0.0
        %450 = vmatprep.subr.mxu0 0.0
        %451 = vmatpush1.msra.mxu0 0.0
        %452 = vmatprep.subr.mxu0 0.0
        %453 = vmatpush1.msra.mxu0 0.0
        %454 = vmatprep.subr.mxu0 0.0
        %455 = vmatpush1.msra.mxu0 0.0
        %456 = vmatprep.subr.mxu0 0.0
        %457 = vmatpush1.msra.mxu0 0.0
        %458 = vmatprep.subr.mxu0 0.0
        %459 = vmatpush1.msra.mxu0 0.0
        %460 = vmatprep.subr.mxu0 0.0
        %461 = vmatpush1.msra.mxu0 0.0
        %462 = vmatprep.subr.mxu0 0.0
        %463 = vmatpush1.msra.mxu0 0.0
        %464 = vmatprep.subr.mxu0 0.0
        %465 = vmatpush1.msra.mxu0 0.0
        %466 = vmatprep.subr.mxu0 0.0
        %467 = vmatpush1.msra.mxu0 0.0
        %468 = vmatprep.subr.mxu0 0.0
        %469 = vmatpush1.msra.mxu0 0.0
        %470 = vmatprep.subr.mxu0 0.0
        %471 = vmatpush1.msra.mxu0 0.0
        %472 = vmatprep.subr.mxu0 0.0
        %473 = vmatpush1.msra.mxu0 0.0
        %474 = vmatprep.subr.mxu0 0.0
        %475 = vmatpush1.msra.mxu0 0.0
        %476 = vmatprep.mubr.f32.mxu0 0.0
        %477 = vmatmul.mubr.f32.gmra.mrb[0].mxu0 %v381
        %v478 = vpop.f32.mrb[0].mxu0
        %v479 = vadd.f32 %v410, %v478
        %v480 = vpop.f32.mrb[0].mxu0
        %481 = vmatprep.mubr.f32.mxu0 0.0
        %482 = vmatmul.mubr.f32.gmra.mrb[0].mxu0 %v382
        %v483 = vpop.f32.mrb[0].mxu0
        %v484 = vadd.f32 %v410, %v483
        %v485 = vpop.f32.mrb[0].mxu0
        %486 = vmatprep.mubr.f32.mxu0 0.0
        %487 = vmatmul.mubr.f32.gmra.mrb[0].mxu0 %v383
        %v488 = vpop.f32.mrb[0].mxu0
        %v489 = vadd.f32 %v410, %v488
        %v490 = vpop.f32.mrb[0].mxu0
        %491 = vmatprep.mubr.f32.mxu0 0.0
        %492 = vmatmul.mubr.f32.gmra.mrb[0].mxu0 %v384
        %v493 = vpop.f32.mrb[0].mxu0
        %v494 = vadd.f32 %v410, %v493
        %v495 = vpop.f32.mrb[0].mxu0
        %496 = vmatprep.mubr.f32.mxu0 0.0
        %497 = vmatmul.mubr.f32.gmra.mrb[0].mxu0 %v385
        %v498 = vpop.f32.mrb[0].mxu0
        %v499 = vadd.f32 %v410, %v498
        %v500 = vpop.f32.mrb[0].mxu0
        %501 = vmatprep.mubr.f32.mxu0 0.0
        %502 = vmatmul.mubr.f32.gmra.mrb[0].mxu0 %v386
        %v503 = vpop.f32.mrb[0].mxu0
        %v504 = vadd.f32 %v410, %v503
        %v505 = vpop.f32.mrb[0].mxu0
        %506 = vmatprep.mubr.f32.mxu0 0.0
        %507 = vmatmul.mubr.f32.gmra.mrb[0].mxu0 %v387
        %v508 = vpop.f32.mrb[0].mxu0
        %v509 = vadd.f32 %v410, %v508
        %v510 = vpop.f32.mrb[0].mxu0
        %511 = vmatprep.mubr.f32.mxu0 0.0
        %512 = vmatmul.mubr.f32.gmra.mrb[0].mxu0 %v388
        %v513 = vpop.f32.mrb[0].mxu0
        %v514 = vadd.f32 %v410, %v513
        %v515 = vpop.f32.mrb[0].mxu0
        %516 = vdwg.mxu0
        %v517 = vlaneseq
        %v518 = vshrl.u32 %v517, 7
        %v519 = vadd.s32 %v518, 8
        %v520 = vadd.s32 %v518, 16
        %v521 = vadd.s32 %v518, 24
        %v522 = vadd.s32 %v518, 32
        %v523 = vadd.s32 %v518, 40
        %v524 = vadd.s32 %v518, 48
        %v525 = vadd.s32 %v518, 56
        %v526 = vlaneseq
        %v527 = vand.u32 %v526, 127
        %v528 = vmul.u32 %v518, 128
        %v529 = vmul.u32 %v519, 128
        %v530 = vmul.u32 %v520, 128
        %v531 = vmul.u32 %v521, 128
        %v532 = vmul.u32 %v522, 128
        %v533 = vmul.u32 %v523, 128
        %v534 = vmul.u32 %v524, 128
        %v535 = vmul.u32 %v525, 128
        %v536 = vadd.s32 %v528, %v527
        %v537 = vadd.s32 %v529, %v527
        %v538 = vadd.s32 %v530, %v527
        %v539 = vadd.s32 %v531, %v527
        %v540 = vadd.s32 %v532, %v527
        %v541 = vadd.s32 %v533, %v527
        %v542 = vadd.s32 %v534, %v527
        %v543 = vadd.s32 %v535, %v527
        %s544 = sld [smem:[#allocation3]]
        %s545 = smul.u32 %s544, 2654435761
        %s546 = smul.u32 %s25, 2246822519
        %s547 = sadd.s32 %s545, %s546
        %v548 = vstv %s547
        %v549 = vadd.s32 %v536, %v548
        %v550 = vadd.s32 %v537, %v548
        %v551 = vadd.s32 %v538, %v548
        %v552 = vadd.s32 %v539, %v548
        %v553 = vadd.s32 %v540, %v548
        %v554 = vadd.s32 %v541, %v548
        %v555 = vadd.s32 %v542, %v548
        %v556 = vadd.s32 %v543, %v548
        %v557 = vshrl.u32 %v549, 16
        %v558 = vshrl.u32 %v550, 16
        %v559 = vshrl.u32 %v551, 16
        %v560 = vshrl.u32 %v552, 16
        %v561 = vshrl.u32 %v553, 16
        %v562 = vshrl.u32 %v554, 16
        %v563 = vshrl.u32 %v555, 16
        %v564 = vshrl.u32 %v556, 16
        %v565 = vxor.u32 %v549, %v557
        %v566 = vxor.u32 %v550, %v558
        %v567 = vxor.u32 %v551, %v559
        %v568 = vxor.u32 %v552, %v560
        %v569 = vxor.u32 %v553, %v561
        %v570 = vxor.u32 %v554, %v562
        %v571 = vxor.u32 %v555, %v563
        %v572 = vxor.u32 %v556, %v564
        %v573 = vmul.u32 %v565, 2146121005
        %v574 = vmul.u32 %v566, 2146121005
        %v575 = vmul.u32 %v567, 2146121005
        %v576 = vmul.u32 %v568, 2146121005
        %v577 = vmul.u32 %v569, 2146121005
        %v578 = vmul.u32 %v570, 2146121005
        %v579 = vmul.u32 %v571, 2146121005
        %v580 = vmul.u32 %v572, 2146121005
        %v581 = vshrl.u32 %v573, 15
        %v582 = vshrl.u32 %v574, 15
        %v583 = vshrl.u32 %v575, 15
        %v584 = vshrl.u32 %v576, 15
        %v585 = vshrl.u32 %v577, 15
        %v586 = vshrl.u32 %v578, 15
        %v587 = vshrl.u32 %v579, 15
        %v588 = vshrl.u32 %v580, 15
        %v589 = vxor.u32 %v573, %v581
        %v590 = vxor.u32 %v574, %v582
        %v591 = vxor.u32 %v575, %v583
        %v592 = vxor.u32 %v576, %v584
        %v593 = vxor.u32 %v577, %v585
        %v594 = vxor.u32 %v578, %v586
        %v595 = vxor.u32 %v579, %v587
        %v596 = vxor.u32 %v580, %v588
        %v597 = vmul.u32 %v589, 2221713035
        %v598 = vmul.u32 %v590, 2221713035
        %v599 = vmul.u32 %v591, 2221713035
        %v600 = vmul.u32 %v592, 2221713035
        %v601 = vmul.u32 %v593, 2221713035
        %v602 = vmul.u32 %v594, 2221713035
        %v603 = vmul.u32 %v595, 2221713035
        %v604 = vmul.u32 %v596, 2221713035
        %v605 = vshrl.u32 %v597, 16
        %v606 = vshrl.u32 %v598, 16
        %v607 = vshrl.u32 %v599, 16
        %v608 = vshrl.u32 %v600, 16
        %v609 = vshrl.u32 %v601, 16
        %v610 = vshrl.u32 %v602, 16
        %v611 = vshrl.u32 %v603, 16
        %v612 = vshrl.u32 %v604, 16
        %v613 = vxor.u32 %v597, %v605
        %v614 = vxor.u32 %v598, %v606
        %v615 = vxor.u32 %v599, %v607
        %v616 = vxor.u32 %v600, %v608
        %v617 = vxor.u32 %v601, %v609
        %v618 = vxor.u32 %v602, %v610
        %v619 = vxor.u32 %v603, %v611
        %v620 = vxor.u32 %v604, %v612
        %v621 = vxor.u32 %v613, 1759714724
        %v622 = vxor.u32 %v614, 1759714724
        %v623 = vxor.u32 %v615, 1759714724
        %v624 = vxor.u32 %v616, 1759714724
        %v625 = vxor.u32 %v617, 1759714724
        %v626 = vxor.u32 %v618, 1759714724
        %v627 = vxor.u32 %v619, 1759714724
        %v628 = vxor.u32 %v620, 1759714724
        %v629 = vshrl.u32 %v621, 16
        %v630 = vshrl.u32 %v622, 16
        %v631 = vshrl.u32 %v623, 16
        %v632 = vshrl.u32 %v624, 16
        %v633 = vshrl.u32 %v625, 16
        %v634 = vshrl.u32 %v626, 16
        %v635 = vshrl.u32 %v627, 16
        %v636 = vshrl.u32 %v628, 16
        %v637 = vxor.u32 %v621, %v629
        %v638 = vxor.u32 %v622, %v630
        %v639 = vxor.u32 %v623, %v631
        %v640 = vxor.u32 %v624, %v632
        %v641 = vxor.u32 %v625, %v633
        %v642 = vxor.u32 %v626, %v634
        %v643 = vxor.u32 %v627, %v635
        %v644 = vxor.u32 %v628, %v636
        %v645 = vmul.u32 %v637, 2146121005
        %v646 = vmul.u32 %v638, 2146121005
        %v647 = vmul.u32 %v639, 2146121005
        %v648 = vmul.u32 %v640, 2146121005
        %v649 = vmul.u32 %v641, 2146121005
        %v650 = vmul.u32 %v642, 2146121005
        %v651 = vmul.u32 %v643, 2146121005
        %v652 = vmul.u32 %v644, 2146121005
        %v653 = vshrl.u32 %v645, 15
        %v654 = vshrl.u32 %v646, 15
        %v655 = vshrl.u32 %v647, 15
        %v656 = vshrl.u32 %v648, 15
        %v657 = vshrl.u32 %v649, 15
        %v658 = vshrl.u32 %v650, 15
        %v659 = vshrl.u32 %v651, 15
        %v660 = vshrl.u32 %v652, 15
        %v661 = vxor.u32 %v645, %v653
        %v662 = vxor.u32 %v646, %v654
        %v663 = vxor.u32 %v647, %v655
        %v664 = vxor.u32 %v648, %v656
        %v665 = vxor.u32 %v649, %v657
        %v666 = vxor.u32 %v650, %v658
        %v667 = vxor.u32 %v651, %v659
        %v668 = vxor.u32 %v652, %v660
        %v669 = vmul.u32 %v661, 2221713035
        %v670 = vmul.u32 %v662, 2221713035
        %v671 = vmul.u32 %v663, 2221713035
        %v672 = vmul.u32 %v664, 2221713035
        %v673 = vmul.u32 %v665, 2221713035
        %v674 = vmul.u32 %v666, 2221713035
        %v675 = vmul.u32 %v667, 2221713035
        %v676 = vmul.u32 %v668, 2221713035
        %v677 = vshrl.u32 %v669, 16
        %v678 = vshrl.u32 %v670, 16
        %v679 = vshrl.u32 %v671, 16
        %v680 = vshrl.u32 %v672, 16
        %v681 = vshrl.u32 %v673, 16
        %v682 = vshrl.u32 %v674, 16
        %v683 = vshrl.u32 %v675, 16
        %v684 = vshrl.u32 %v676, 16
        %v685 = vxor.u32 %v669, %v677
        %v686 = vxor.u32 %v670, %v678
        %v687 = vxor.u32 %v671, %v679
        %v688 = vxor.u32 %v672, %v680
        %v689 = vxor.u32 %v673, %v681
        %v690 = vxor.u32 %v674, %v682
        %v691 = vxor.u32 %v675, %v683
        %v692 = vxor.u32 %v676, %v684
        %v693 = vshrl.u32 %v685, 8
        %v694 = vshrl.u32 %v686, 8
        %v695 = vshrl.u32 %v687, 8
        %v696 = vshrl.u32 %v688, 8
        %v697 = vshrl.u32 %v689, 8
        %v698 = vshrl.u32 %v690, 8
        %v699 = vshrl.u32 %v691, 8
        %v700 = vshrl.u32 %v692, 8
        %v701 = vcvt.s32.f32 %v693
        %v702 = vcvt.s32.f32 %v694
        %v703 = vcvt.s32.f32 %v695
        %v704 = vcvt.s32.f32 %v696
        %v705 = vcvt.s32.f32 %v697
        %v706 = vcvt.s32.f32 %v698
        %v707 = vcvt.s32.f32 %v699
        %v708 = vcvt.s32.f32 %v700
        %v709 = vmul.f32 %v701, 5.9604645e-08
        %v710 = vmul.f32 %v702, 5.9604645e-08
        %v711 = vmul.f32 %v703, 5.9604645e-08
        %v712 = vmul.f32 %v704, 5.9604645e-08
        %v713 = vmul.f32 %v705, 5.9604645e-08
        %v714 = vmul.f32 %v706, 5.9604645e-08
        %v715 = vmul.f32 %v707, 5.9604645e-08
        %v716 = vmul.f32 %v708, 5.9604645e-08
        %vm717 = vcmp.lt.f32.partialorder %v709, 0.9
        %vm718 = vcmp.lt.f32.partialorder %v710, 0.9
        %vm719 = vcmp.lt.f32.partialorder %v711, 0.9
        %vm720 = vcmp.lt.f32.partialorder %v712, 0.9
        %vm721 = vcmp.lt.f32.partialorder %v713, 0.9
        %vm722 = vcmp.lt.f32.partialorder %v714, 0.9
        %vm723 = vcmp.lt.f32.partialorder %v715, 0.9
        %vm724 = vcmp.lt.f32.partialorder %v716, 0.9
        %v725 = vmul.f32 %v479, 1.1111112
        %v726 = vmul.f32 %v484, 1.1111112
        %v727 = vmul.f32 %v489, 1.1111112
        %v728 = vmul.f32 %v494, 1.1111112
        %v729 = vmul.f32 %v499, 1.1111112
        %v730 = vmul.f32 %v504, 1.1111112
        %v731 = vmul.f32 %v509, 1.1111112
        %v732 = vmul.f32 %v514, 1.1111112
        %v733 = vsel %vm717, %v725, 0.0
        %v734 = vsel %vm718, %v726, 0.0
        %v735 = vsel %vm719, %v727, 0.0
        %v736 = vsel %vm720, %v728, 0.0
        %v737 = vsel %vm721, %v729, 0.0
        %v738 = vsel %vm722, %v730, 0.0
        %v739 = vsel %vm723, %v731, 0.0
        %v740 = vsel %vm724, %v732, 0.0
        %v741 = vadd.f32 %v733, %v262
        %v742 = vadd.f32 %v734, %v263
        %v743 = vadd.f32 %v735, %v264
        %v744 = vadd.f32 %v736, %v265
        %v745 = vadd.f32 %v737, %v266
        %v746 = vadd.f32 %v738, %v267
        %v747 = vadd.f32 %v739, %v268
        %v748 = vadd.f32 %v740, %v269
        %749 = vst [vmem:[%s259] sm:$0xff] %v741
        %750 = vst [vmem:[%s259 + $0x8] sm:$0xff] %v742
        %751 = vst [vmem:[%s259 + $0x10] sm:$0xff] %v743
        %752 = vst [vmem:[%s259 + $0x18] sm:$0xff] %v744
        %753 = vst [vmem:[%s259 + $0x20] sm:$0xff] %v745
        %754 = vst [vmem:[%s259 + $0x28] sm:$0xff] %v746
        %755 = vst [vmem:[%s259 + $0x30] sm:$0xff] %v747
        %756 = vst [vmem:[%s259 + $0x38] sm:$0xff] %v748
        %s757 = sand.u32 %s143, 1
        %s758 = scalar_lea.sflag [#allocation6], %s757
        %s759 = sand.u32 %s143, 1
        %s760 = smul.addr %s759, 64
        %s761 = scalar_lea.vmem [#allocation9], %s760
        // Predicated region
        $region49: #{tpu_custom_call.1} parent=39 // pred_check
          %p762 = pneg %p153
        $region50: #{tpu_custom_call.1} parent=39 // pred_check_branch
          %764 = sbr.rel (%p762) target = $region52
        $region51: #{tpu_custom_call.1} parent=39 // pred_region
          %s765 = smul.u32 8, %s25
          %s767 = ssub.s32 1024, 1024
          %768 = vsyncadd %s758, %s767
          %s769 = smul.addr %s765, 128
          %s770 = scalar_lea.hbm %s6, %s769
          %s771 = sshll.u32 %s761, 4
          %s772 = int_to_ptr.vmem [resolvable:$true] %s771
          %777 = dma.vmem_to_hbm [thread:$0]  %s772, 1024, %s770, %s758, 128, 128, 8
        $region52: #{tpu_custom_call.1} parent=39 // pred_fallthru
          _
      $region40: #{tpu_custom_call.1} parent=5 // pred_fallthru
        _
      %p778 = scmp.le.s32.totalorder 2, %s20
      // Predicated region
      $region53: #{tpu_custom_call.1} parent=5 // pred_check
        %p779 = pneg %p778
      $region54: #{tpu_custom_call.1} parent=5 // pred_check_branch
        %781 = sbr.rel (%p779) target = $region56
      $region55: #{tpu_custom_call.1} parent=5 // pred_region
        %s782 = ssub.s32 %s20, 2
        // Predicated region
        $region57: #{tpu_custom_call.1} parent=55 // pred_check
          %p783 = pneg %p159
        $region58: #{tpu_custom_call.1} parent=55 // pred_check_branch
          %785 = sbr.rel (%p783) target = $region60
        $region59: #{tpu_custom_call.1} parent=55 // pred_region
          %s786 = sand.u32 %s144, 1
          %s787 = scalar_lea.sflag [#allocation6], %s786
          %s788 = sand.u32 %s144, 1
          %s789 = smul.addr %s788, 64
          %s790 = scalar_lea.vmem [#allocation9], %s789
          %791 = dma.done %s787, 1024
        $region60: #{tpu_custom_call.1} parent=55 // pred_fallthru
          _
      $region56: #{tpu_custom_call.1} parent=5 // pred_fallthru
        _
    $region6: #{tpu_custom_call.1} parent=1 // loop_footer
      %s24 = sadd.s32 1, %s20
    $region7: #{tpu_custom_call.1} parent=1 // loop_footer_branch
      %19 = sbr.rel target = $region3
    $region8: #{tpu_custom_call.1} parent=1 // loop_exit
      _
    %792 = vsyncpa [#allocation5], 1
    %s793 = scalar_lea.sflag [#allocation5], 1
    %794 = vsyncpa %s793, 1
    %795 = vsyncpa [#allocation8], 1
    %796 = vsyncpa [#allocation6], 1
    %s797 = scalar_lea.sflag [#allocation6], 1
    %798 = vsyncpa %s797, 1

</llo_original>
